<compile_context>
chip_gen: v7x
topology: tpu7x:2x2x1
jax: 0.10.0
libtpu: 0.0.40
codegen_flags: <defaults>
</compile_context>

<pallas_src>
import jax
import jax.numpy as jnp
from jax.experimental import pallas as pl
from jax.experimental.pallas import tpu as pltpu


def _leaky_relu(x, slope=0.2):
    return jnp.where(x > 0, x, slope * x)


def _round_up(n, m):
    return ((n + m - 1) // m) * m


def _cdiv(a, b):
    return -(-a // b)


# --------------------------------------------------------------------------- #
# Kernel
# --------------------------------------------------------------------------- #
def critic_kernel(x_ref, w1_ref, b1_ref, w2_ref, b2_ref,
                  w3_ref, b3_ref, w4t_ref, b4_ref, o_ref):
    """One batch tile of the fused 4-layer MLP.

    x is streamed in its stored dtype (no extra wrapper HBM pass); the MXU
    operand cast happens here on the VMEM tile. Weights/biases use constant
    index_maps so they stay VMEM-resident across grid steps. Bias adds and
    LeakyReLU are computed in f32 on the VPU.
    """
    cdt = w1_ref.dtype                       # MXU operand dtype (bf16 or f32)

    x = x_ref[...].astype(cdt)               # in-kernel cast (VPU), not a wrapper pass
    h = jnp.dot(x, w1_ref[...], preferred_element_type=jnp.float32)
    h = _leaky_relu(h + b1_ref[...])

    h = jnp.dot(h.astype(cdt), w2_ref[...], preferred_element_type=jnp.float32)
    h = _leaky_relu(h + b2_ref[...])

    h = jnp.dot(h.astype(cdt), w3_ref[...], preferred_element_type=jnp.float32)
    h = _leaky_relu(h + b3_ref[...])

    # Final (H -> 1) layer: elementwise multiply + lane reduction. A (B,H)x(H,1)
    # MXU matmul would waste nearly all result columns; VPU/XLU slots are idle.
    w4_row = w4t_ref[...].astype(jnp.float32)            # (1, H_pad)
    out = jnp.sum(h * w4_row, axis=-1, keepdims=True) + b4_ref[0]
    o_ref[...] = out.astype(o_ref.dtype)


# --------------------------------------------------------------------------- #
# Sizing helpers (generation-aware VMEM budget and batch tiling)
# --------------------------------------------------------------------------- #
def _vmem_budget_bytes():
    """~80% of physical VMEM (headroom for compiler scratch / semaphores)."""
    cap = None
    try:
        info = pltpu.get_tpu_info()
        cap = getattr(info, "vmem_capacity_bytes", None)
    except Exception:
        cap = None
    if not cap:
        cap = 64 * 2 ** 20            # conservative fallback: assume v7x-sized VMEM
    return int(0.8 * cap)


def _max_tile_rows(budget, d_in, h_pad, x_bytes, w_bytes):
    """Largest streamed-row count that fits the VMEM budget (conservative)."""
    # Resident weight/bias blocks (assume the pipeline double-buffers them).
    resident = 2 * ((d_in * h_pad + 2 * h_pad * h_pad + h_pad) * w_bytes
                    + 3 * h_pad * 4)
    per_row = 2 * d_in * x_bytes      # double-buffered x stream
    per_row += 6 * h_pad * 4          # live f32 intermediates (generous)
    per_row += 2 * 4                  # double-buffered output column
    avail = budget - resident - (1 << 20)
    return max(16, avail // per_row)


def _choose_tile(B, max_rows, target=1024, sub=16, min_tiles=1):
    """Pick (tile_b, n_tiles): tile a multiple of 16 (or == B when single block),
    minimizing ragged overshoot while respecting the VMEM-derived row cap."""
    max_rows = max(sub, (max_rows // sub) * sub)
    target = max(sub, min(target, max_rows))
    n = max(min_tiles, _cdiv(B, target))
    if n <= 1:
        return B, 1                   # single block == full batch dim (always legal)
    tile = min(_round_up(_cdiv(B, n), sub), max_rows)
    n = _cdiv(B, tile)
    return tile, n


# --------------------------------------------------------------------------- #
# Parameter preparation (one-time; hoisted out of the per-call hot path)
# --------------------------------------------------------------------------- #
def prepare_critic_params(params, use_bf16=True):
    """Pad hidden dim to a lane multiple (math-exact zero padding), lay weights
    out as (in, out) so the kernel does x @ W + b, and cast once."""
    (w1, b1), (w2, b2), (w3, b3), (w4, b4) = params
    H = w1.shape[1]
    h_pad = _round_up(H, 128)
    ph = h_pad - H
    wdt = jnp.bfloat16 if use_bf16 else jnp.float32

    w1p = jnp.pad(w1, ((0, 0), (0, ph))).astype(wdt)
    w2p = jnp.pad(w2, ((0, ph), (0, ph))).astype(wdt)
    w3p = jnp.pad(w3, ((0, ph), (0, ph))).astype(wdt)
    w4t = jnp.pad(w4.reshape(-1, 1).T, ((0, 0), (0, ph))).astype(wdt)  # (1, H_pad)
    b1p = jnp.pad(b1.reshape(1, -1), ((0, 0), (0, ph))).astype(jnp.float32)
    b2p = jnp.pad(b2.reshape(1, -1), ((0, 0), (0, ph))).astype(jnp.float32)
    b3p = jnp.pad(b3.reshape(1, -1), ((0, 0), (0, ph))).astype(jnp.float32)
    b4p = b4.reshape(-1).astype(jnp.float32)                           # (1,) -> SMEM
    return (w1p, b1p, w2p, b2p, w3p, b3p, w4t, b4p)


# --------------------------------------------------------------------------- #
# Forward
# --------------------------------------------------------------------------- #
def critic_forward(image, prepared, *, max_tile_b=1024):
    """image: (B, C, H, W). prepared: output of prepare_critic_params.
    Returns (B, 1) float32."""
    w1p, b1p, w2p, b2p, w3p, b3p, w4t, b4p = prepared

    B = image.shape[0]
    x = image.reshape(B, -1)                  # nn.Flatten(): free row-major reshape
    if not jnp.issubdtype(x.dtype, jnp.floating):
        x = x.astype(jnp.float32)
    d_in = x.shape[1]
    h_pad = w1p.shape[1]
    assert w1p.shape[0] == d_in, (w1p.shape, d_in)

    budget = _vmem_budget_bytes()
    x_bytes = jnp.dtype(x.dtype).itemsize
    w_bytes = jnp.dtype(w1p.dtype).itemsize
    max_rows = _max_tile_rows(budget, d_in, h_pad, x_bytes, w_bytes)
    min_tiles = 2 if B >= 32 else 1           # keep both v7x TensorCores busy
    tile_b, n_tiles = _choose_tile(B, max_rows, target=max_tile_b,
                                   min_tiles=min_tiles)

    def resident(shape):
        # Constant block index -> fetched once, stays in VMEM across grid steps.
        return pl.BlockSpec(shape, lambda i: (0, 0))

    in_specs = [
        # Streamed operand; auto double-buffered by the Pallas pipeline. Ragged
        # last block: OOB rows read garbage (per-row independent math) and OOB
        # output rows are dropped, so no batch padding / extra HBM pass needed.
        pl.BlockSpec((tile_b, d_in), lambda i: (i, 0)),
        resident(w1p.shape), resident(b1p.shape),
        resident(w2p.shape), resident(b2p.shape),
        resident(w3p.shape), resident(b3p.shape),
        resident(w4t.shape),
        pl.BlockSpec(memory_space=pltpu.MemorySpace.SMEM),   # scalar b4
    ]
    out_spec = pl.BlockSpec((tile_b, 1), lambda i: (i, 0))

    out = pl.pallas_call(
        critic_kernel,
        out_shape=jax.ShapeDtypeStruct((B, 1), jnp.float32),
        grid=(n_tiles,),
        in_specs=in_specs,
        out_specs=out_spec,
        compiler_params=pltpu.CompilerParams(
            dimension_semantics=("parallel",),
            vmem_limit_bytes=budget,
        ),
    )(x, w1p, b1p, w2p, b2p, w3p, b3p, w4t, b4p)

    return out


# --------------------------------------------------------------------------- #
# Reference + init (PyTorch-style)
# --------------------------------------------------------------------------- #
def init_params(key, d_in, num_hiddens):
    """PyTorch Linear init: U(-1/sqrt(fan_in), 1/sqrt(fan_in)); weights (in, out)."""
    dims = [(d_in, num_hiddens), (num_hiddens, num_hiddens),
            (num_hiddens, num_hiddens), (num_hiddens, 1)]
    params = []
    for (fan_in, fan_out) in dims:
        key, kw, kb = jax.random.split(key, 3)
        bound = 1.0 / jnp.sqrt(jnp.float32(fan_in))
        w = jax.random.uniform(kw, (fan_in, fan_out), jnp.float32, -bound, bound)
        b = jax.random.uniform(kb, (1, fan_out), jnp.float32, -bound, bound)
        params.append((w, b))
    return params


def critic_reference(image, params):
    x = image.reshape(image.shape[0], -1).astype(jnp.float32)
    (w1, b1), (w2, b2), (w3, b3), (w4, b4) = params
    h = _leaky_relu(x @ w1 + b1.reshape(1, -1))
    h = _leaky_relu(h @ w2 + b2.reshape(1, -1))
    h = _leaky_relu(h @ w3 + b3.reshape(1, -1))
    return h @ w4 + b4.reshape(1, -1)


if __name__ == "__main__":
    # Small shapes consistent with the module: batch=2, in_channels=1,
    # img_size=16, num_hiddens=32.
    B, C, IMG, H = 2, 1, 16, 32
    key = jax.random.PRNGKey(0)
    k_img, k_par, k_big = jax.random.split(key, 3)

    image = jax.random.normal(k_img, (B, C, IMG, IMG), jnp.float32)
    params = init_params(k_par, IMG * IMG * C, H)
    ref = critic_reference(image, params)

    # One-time weight prep (hoisted out of the hot path), reused across calls.
    prep_f32 = prepare_critic_params(params, use_bf16=False)
    prep_bf16 = prepare_critic_params(params, use_bf16=True)

    # 1) f32 path: tight check against the PyTorch-style reference.
    out_f32 = jax.block_until_ready(critic_forward(image, prep_f32))
    assert out_f32.shape == (B, 1), out_f32.shape
    assert jnp.allclose(out_f32, ref, atol=1e-3, rtol=1e-3), (out_f32, ref)

    # 2) bf16-weight path (f32 accumulation, f32 activations): loose check.
    out_bf16 = jax.block_until_ready(critic_forward(image, prep_bf16))
    assert out_bf16.shape == (B, 1), out_bf16.shape
    assert jnp.allclose(out_bf16, ref, atol=3e-2, rtol=3e-2), (out_bf16, ref)

    # 3) Multi-tile grid + ragged last block (B not a tile multiple, no padding).
    big = jax.random.normal(k_big, (300, C, IMG, IMG), jnp.float32)
    ref_big = critic_reference(big, params)
    out_big = jax.block_until_ready(critic_forward(big, prep_f32))
    assert out_big.shape == (300, 1), out_big.shape
    assert jnp.allclose(out_big, ref_big, atol=1e-3, rtol=1e-3)

    # 4) Forced small tile (more grid steps, ragged last block) + bf16 weights.
    out_big_bf16 = jax.block_until_ready(
        critic_forward(big, prep_bf16, max_tile_b=128))
    assert out_big_bf16.shape == (300, 1), out_big_bf16.shape
    assert jnp.allclose(out_big_bf16, ref_big, atol=3e-2, rtol=3e-2)

    print("KERNEL_OK")
</pallas_src>

<mosaic_0001>
module attributes {stable_mosaic.version = 11 : i64} {
  func.func @critic_kernel(%arg0: i32, %arg1: memref<2x256xf32, #tpu.memory_space<vmem>>, %arg2: memref<256x128xf32, #tpu.memory_space<vmem>>, %arg3: memref<1x128xf32, #tpu.memory_space<vmem>>, %arg4: memref<128x128xf32, #tpu.memory_space<vmem>>, %arg5: memref<1x128xf32, #tpu.memory_space<vmem>>, %arg6: memref<128x128xf32, #tpu.memory_space<vmem>>, %arg7: memref<1x128xf32, #tpu.memory_space<vmem>>, %arg8: memref<1x128xf32, #tpu.memory_space<vmem>>, %arg9: memref<1xf32, #tpu.memory_space<smem>>, %arg10: memref<2x1xf32, #tpu.memory_space<vmem>>) attributes {dimension_semantics = [#tpu.dimension_semantics<parallel>], iteration_bounds = array<i64: 1>, scalar_prefetch = 0 : i64, scratch_operands = 0 : i64, tpu.core_type = #tpu.core_type<tc>, window_params = [{transform_indices = @transform_0, window_bounds = array<i64: 2, 256>}, {pipeline_mode = #tpu.pipeline_mode<synchronous>, transform_indices = @transform_1, window_bounds = array<i64: 256, 128>}, {pipeline_mode = #tpu.pipeline_mode<synchronous>, transform_indices = @transform_2, window_bounds = array<i64: 1, 128>}, {pipeline_mode = #tpu.pipeline_mode<synchronous>, transform_indices = @transform_3, window_bounds = array<i64: 128, 128>}, {pipeline_mode = #tpu.pipeline_mode<synchronous>, transform_indices = @transform_4, window_bounds = array<i64: 1, 128>}, {pipeline_mode = #tpu.pipeline_mode<synchronous>, transform_indices = @transform_5, window_bounds = array<i64: 128, 128>}, {pipeline_mode = #tpu.pipeline_mode<synchronous>, transform_indices = @transform_6, window_bounds = array<i64: 1, 128>}, {pipeline_mode = #tpu.pipeline_mode<synchronous>, transform_indices = @transform_7, window_bounds = array<i64: 1, 128>}, {transform_indices = @transform_8, window_bounds = array<i64: 1>}, {transform_indices = @transform_9, window_bounds = array<i64: 2, 1>}]} {
    %c0 = arith.constant 0 : index
    %c0_0 = arith.constant 0 : index
    %0 = vector.load %arg1[%c0, %c0_0] : memref<2x256xf32, #tpu.memory_space<vmem>>, vector<2x256xf32>
    %c0_1 = arith.constant 0 : index
    %c0_2 = arith.constant 0 : index
    %1 = vector.load %arg2[%c0_1, %c0_2] : memref<256x128xf32, #tpu.memory_space<vmem>>, vector<256x128xf32>
    %cst = arith.constant dense<0.000000e+00> : vector<2x128xf32>
    %2 = tpu.matmul %0, %1, %cst {dimension_numbers = #tpu.dot_dimension_numbers<[1], [0], [0], [1], [0, 0, 1, 1], [], []>} : vector<2x256xf32>, vector<256x128xf32>, vector<2x128xf32> -> vector<2x128xf32>
    %c0_3 = arith.constant 0 : index
    %c0_4 = arith.constant 0 : index
    %3 = vector.load %arg3[%c0_3, %c0_4] : memref<1x128xf32, #tpu.memory_space<vmem>>, vector<1x128xf32>
    %4 = vector.broadcast %3 : vector<1x128xf32> to vector<2x128xf32>
    %5 = arith.addf %2, %4 : vector<2x128xf32>
    %cst_5 = arith.constant 0.000000e+00 : f32
    %6 = vector.broadcast %cst_5 : f32 to vector<2x128xf32>
    %7 = arith.cmpf ogt, %5, %6 : vector<2x128xf32>
    %cst_6 = arith.constant 2.000000e-01 : f32
    %8 = vector.broadcast %cst_6 : f32 to vector<2x128xf32>
    %9 = arith.mulf %8, %5 : vector<2x128xf32>
    %10 = arith.select %7, %5, %9 : vector<2x128xi1>, vector<2x128xf32>
    %c0_7 = arith.constant 0 : index
    %c0_8 = arith.constant 0 : index
    %11 = vector.load %arg4[%c0_7, %c0_8] : memref<128x128xf32, #tpu.memory_space<vmem>>, vector<128x128xf32>
    %cst_9 = arith.constant dense<0.000000e+00> : vector<2x128xf32>
    %12 = tpu.matmul %10, %11, %cst_9 {dimension_numbers = #tpu.dot_dimension_numbers<[1], [0], [0], [1], [0, 0, 1, 1], [], []>} : vector<2x128xf32>, vector<128x128xf32>, vector<2x128xf32> -> vector<2x128xf32>
    %c0_10 = arith.constant 0 : index
    %c0_11 = arith.constant 0 : index
    %13 = vector.load %arg5[%c0_10, %c0_11] : memref<1x128xf32, #tpu.memory_space<vmem>>, vector<1x128xf32>
    %14 = vector.broadcast %13 : vector<1x128xf32> to vector<2x128xf32>
    %15 = arith.addf %12, %14 : vector<2x128xf32>
    %cst_12 = arith.constant 0.000000e+00 : f32
    %16 = vector.broadcast %cst_12 : f32 to vector<2x128xf32>
    %17 = arith.cmpf ogt, %15, %16 : vector<2x128xf32>
    %cst_13 = arith.constant 2.000000e-01 : f32
    %18 = vector.broadcast %cst_13 : f32 to vector<2x128xf32>
    %19 = arith.mulf %18, %15 : vector<2x128xf32>
    %20 = arith.select %17, %15, %19 : vector<2x128xi1>, vector<2x128xf32>
    %c0_14 = arith.constant 0 : index
    %c0_15 = arith.constant 0 : index
    %21 = vector.load %arg6[%c0_14, %c0_15] : memref<128x128xf32, #tpu.memory_space<vmem>>, vector<128x128xf32>
    %cst_16 = arith.constant dense<0.000000e+00> : vector<2x128xf32>
    %22 = tpu.matmul %20, %21, %cst_16 {dimension_numbers = #tpu.dot_dimension_numbers<[1], [0], [0], [1], [0, 0, 1, 1], [], []>} : vector<2x128xf32>, vector<128x128xf32>, vector<2x128xf32> -> vector<2x128xf32>
    %c0_17 = arith.constant 0 : index
    %c0_18 = arith.constant 0 : index
    %23 = vector.load %arg7[%c0_17, %c0_18] : memref<1x128xf32, #tpu.memory_space<vmem>>, vector<1x128xf32>
    %24 = vector.broadcast %23 : vector<1x128xf32> to vector<2x128xf32>
    %25 = arith.addf %22, %24 : vector<2x128xf32>
    %cst_19 = arith.constant 0.000000e+00 : f32
    %26 = vector.broadcast %cst_19 : f32 to vector<2x128xf32>
    %27 = arith.cmpf ogt, %25, %26 : vector<2x128xf32>
    %cst_20 = arith.constant 2.000000e-01 : f32
    %28 = vector.broadcast %cst_20 : f32 to vector<2x128xf32>
    %29 = arith.mulf %28, %25 : vector<2x128xf32>
    %30 = arith.select %27, %25, %29 : vector<2x128xi1>, vector<2x128xf32>
    %c0_21 = arith.constant 0 : index
    %c0_22 = arith.constant 0 : index
    %31 = vector.load %arg8[%c0_21, %c0_22] : memref<1x128xf32, #tpu.memory_space<vmem>>, vector<1x128xf32>
    %32 = vector.broadcast %31 : vector<1x128xf32> to vector<2x128xf32>
    %33 = arith.mulf %30, %32 : vector<2x128xf32>
    %cst_23 = arith.constant dense<0.000000e+00> : vector<2xf32>
    %34 = vector.multi_reduction <add>, %33, %cst_23 [1] : vector<2x128xf32> to vector<2xf32>
    %35 = vector.shape_cast %34 : vector<2xf32> to vector<2x1xf32>
    %c0_24 = arith.constant 0 : index
    %36 = memref.load %arg9[%c0_24] : memref<1xf32, #tpu.memory_space<smem>>
    %37 = vector.broadcast %36 : f32 to vector<2x1xf32>
    %38 = arith.addf %35, %37 : vector<2x1xf32>
    %c0_25 = arith.constant 0 : index
    %c0_26 = arith.constant 0 : index
    %39 = vector.load %arg10[%c0_25, %c0_26] : memref<2x1xf32, #tpu.memory_space<vmem>>, vector<2x1xf32>
    tpu.vector_store %arg10[%c0_25, %c0_26], %38 {strides = array<i32>} : memref<2x1xf32, #tpu.memory_space<vmem>>, vector<2x1xf32>,
    return
  }
  func.func @transform_0(%arg0: i32) -> (i32, i32) {
    %c0_i32 = arith.constant 0 : i32
    %c0_i32_0 = arith.constant 0 : i32
    return %arg0, %c0_i32 : i32, i32
  }
  func.func @transform_1(%arg0: i32) -> (i32, i32) {
    %c0_i32 = arith.constant 0 : i32
    %c0_i32_0 = arith.constant 0 : i32
    %c0_i32_1 = arith.constant 0 : i32
    return %c0_i32, %c0_i32_0 : i32, i32
  }
  func.func @transform_2(%arg0: i32) -> (i32, i32) {
    %c0_i32 = arith.constant 0 : i32
    %c0_i32_0 = arith.constant 0 : i32
    %c0_i32_1 = arith.constant 0 : i32
    return %c0_i32, %c0_i32_0 : i32, i32
  }
  func.func @transform_3(%arg0: i32) -> (i32, i32) {
    %c0_i32 = arith.constant 0 : i32
    %c0_i32_0 = arith.constant 0 : i32
    %c0_i32_1 = arith.constant 0 : i32
    return %c0_i32, %c0_i32_0 : i32, i32
  }
  func.func @transform_4(%arg0: i32) -> (i32, i32) {
    %c0_i32 = arith.constant 0 : i32
    %c0_i32_0 = arith.constant 0 : i32
    %c0_i32_1 = arith.constant 0 : i32
    return %c0_i32, %c0_i32_0 : i32, i32
  }
  func.func @transform_5(%arg0: i32) -> (i32, i32) {
    %c0_i32 = arith.constant 0 : i32
    %c0_i32_0 = arith.constant 0 : i32
    %c0_i32_1 = arith.constant 0 : i32
    return %c0_i32, %c0_i32_0 : i32, i32
  }
  func.func @transform_6(%arg0: i32) -> (i32, i32) {
    %c0_i32 = arith.constant 0 : i32
    %c0_i32_0 = arith.constant 0 : i32
    %c0_i32_1 = arith.constant 0 : i32
    return %c0_i32, %c0_i32_0 : i32, i32
  }
  func.func @transform_7(%arg0: i32) -> (i32, i32) {
    %c0_i32 = arith.constant 0 : i32
    %c0_i32_0 = arith.constant 0 : i32
    %c0_i32_1 = arith.constant 0 : i32
    return %c0_i32, %c0_i32_0 : i32, i32
  }
  func.func @transform_8(%arg0: i32) -> i32 {
    %c0_i32 = arith.constant 0 : i32
    %c0_i32_0 = arith.constant 0 : i32
    return %c0_i32 : i32
  }
  func.func @transform_9(%arg0: i32) -> (i32, i32) {
    %c0_i32 = arith.constant 0 : i32
    %c0_i32_0 = arith.constant 0 : i32
    return %arg0, %c0_i32 : i32, i32
  }
}

</mosaic_0001>

<llo_original>
// kernel: tpu_custom_call.1
$region0: #{tpu_custom_call.1}
  #allocation0 [shape = 'u32[]', space=smem, size = 0x4, offset = 0x4, fixed_abs, tag = 'smem constant byte address 0x4 - core index']
  #allocation1 [shape = 'u32[144,128]{1,0:T(1,128)}', space=vmem, size = 0x12000, scoped, tag = 'internal scratch']
  #allocation2 [shape = 'f32[1]{0:T(128)S(6)}', space=smem, size = 0x200, scoped, tag = 'scoped memory for tpu_custom_call.1']
  %s0 = inlined_call_operand.hbm [shape: f32[2,256], index: 0, kind: input, shape index: {}]
  %s1 = inlined_call_operand.hbm [shape: f32[256,128], index: 1, kind: input, shape index: {}]
  %s2 = inlined_call_operand.vmem [shape: f32[1,128], index: 2, kind: input, shape index: {}]
  %s3 = inlined_call_operand.hbm [shape: f32[128,128], index: 3, kind: input, shape index: {}]
  %s4 = inlined_call_operand.vmem [shape: f32[1,128], index: 4, kind: input, shape index: {}]
  %s5 = inlined_call_operand.hbm [shape: f32[128,128], index: 5, kind: input, shape index: {}]
  %s6 = inlined_call_operand.vmem [shape: f32[1,128], index: 6, kind: input, shape index: {}]
  %s7 = inlined_call_operand.vmem [shape: f32[1,128], index: 7, kind: input, shape index: {}]
  %s8 = inlined_call_operand.<no memory space> [shape: f32[1], index: 8, kind: input, shape index: {}]
  %s9 = inlined_call_operand.vmem [shape: f32[2,1], index: 9, kind: output, shape index: {}]
  %s10 = sld [smem:[#allocation0]]
  $region62: #{tpu_custom_call.1} parent=0
    _
  %s12 = ssub.s32 1, %s10
  %s13 = scalar_select 0, %s12, %s10
  %14 = sst [smem:[#allocation2]] %s8
  $region1: #{tpu_custom_call.1} parent=0
    #allocation3 [shape = 'u8[2048]{0}', space=vmem, size = 0x800, scoped, tag = 'input window, operand 0, single buffered']
    #allocation4 [shape = 's32[1]{0}', space=sflag, size = 0x4, scoped, tag = 'scoped memory for tpu_custom_call.1']
    #allocation5 [shape = 'u8[131072]{0}', space=vmem, size = 0x20000, scoped, tag = 'input window, operand 1, single buffered']
    #allocation6 [shape = 's32[1]{0}', space=sflag, size = 0x4, scoped, tag = 'scoped memory for tpu_custom_call.1']
    #allocation7 [shape = 'u8[65536]{0}', space=vmem, size = 0x10000, scoped, tag = 'input window, operand 3, single buffered']
    #allocation8 [shape = 'u8[65536]{0}', space=vmem, size = 0x10000, scoped, tag = 'input window, operand 5, single buffered']
    #allocation9 [shape = 's32[1]{0}', space=sflag, size = 0x4, scoped, tag = 'scoped memory for tpu_custom_call.1']
    %15 = vsyncpa [#allocation4], 0
    %16 = vsyncpa [#allocation6], 0
    %17 = vsyncpa [#allocation9], 0
    // Predicated region
    $region2: #{tpu_custom_call.1} parent=1 // pred_check
      _
    $region3: #{tpu_custom_call.1} parent=1 // pred_check_branch
      %19 = sbr.rel (0) target = $region5
    $region4: #{tpu_custom_call.1} parent=1 // pred_region
      %s21 = ssub.s32 64, 64
      %22 = vsyncadd [#allocation4], %s21
      %s24 = sshll.u32 [#allocation3], 4
      %s25 = int_to_ptr.vmem [resolvable:$true] %s24
      %27 = dma.hbm_to_vmem [thread:$0]  %s0, 64, %s25, [#allocation4]
    $region5: #{tpu_custom_call.1} parent=1 // pred_fallthru
      _
    // Predicated region
    $region6: #{tpu_custom_call.1} parent=1 // pred_check
      _
    $region7: #{tpu_custom_call.1} parent=1 // pred_check_branch
      %29 = sbr.rel (0) target = $region9
    $region8: #{tpu_custom_call.1} parent=1 // pred_region
      %s31 = ssub.s32 4096, 4096
      %32 = vsyncadd [#allocation6], %s31
      %s33 = sshll.u32 [#allocation5], 4
      %s34 = int_to_ptr.vmem [resolvable:$true] %s33
      %39 = dma.hbm_to_vmem [thread:$0]  %s1, 4096, %s34, [#allocation6], 128, 128, 8
    $region9: #{tpu_custom_call.1} parent=1 // pred_fallthru
      _
    // Predicated region
    $region10: #{tpu_custom_call.1} parent=1 // pred_check
      _
    $region11: #{tpu_custom_call.1} parent=1 // pred_check_branch
      %41 = sbr.rel (0) target = $region13
    $region12: #{tpu_custom_call.1} parent=1 // pred_region
      _
    $region13: #{tpu_custom_call.1} parent=1 // pred_fallthru
      _
    // Predicated region
    $region14: #{tpu_custom_call.1} parent=1 // pred_check
      _
    $region15: #{tpu_custom_call.1} parent=1 // pred_check_branch
      %43 = sbr.rel (0) target = $region17
    $region16: #{tpu_custom_call.1} parent=1 // pred_region
      %s45 = ssub.s32 2048, 2048
      %46 = vsyncadd [#allocation6], %s45
      %s47 = sshll.u32 [#allocation7], 4
      %s48 = int_to_ptr.vmem [resolvable:$true] %s47
      %53 = dma.hbm_to_vmem [thread:$0]  %s3, 2048, %s48, [#allocation6], 128, 128, 8
    $region17: #{tpu_custom_call.1} parent=1 // pred_fallthru
      _
    // Predicated region
    $region18: #{tpu_custom_call.1} parent=1 // pred_check
      _
    $region19: #{tpu_custom_call.1} parent=1 // pred_check_branch
      %55 = sbr.rel (0) target = $region21
    $region20: #{tpu_custom_call.1} parent=1 // pred_region
      _
    $region21: #{tpu_custom_call.1} parent=1 // pred_fallthru
      _
    // Predicated region
    $region22: #{tpu_custom_call.1} parent=1 // pred_check
      _
    $region23: #{tpu_custom_call.1} parent=1 // pred_check_branch
      %57 = sbr.rel (0) target = $region25
    $region24: #{tpu_custom_call.1} parent=1 // pred_region
      %s59 = ssub.s32 2048, 2048
      %60 = vsyncadd [#allocation9], %s59
      %s61 = sshll.u32 [#allocation8], 4
      %s62 = int_to_ptr.vmem [resolvable:$true] %s61
      %67 = dma.hbm_to_vmem [thread:$0]  %s5, 2048, %s62, [#allocation9], 128, 128, 8
    $region25: #{tpu_custom_call.1} parent=1 // pred_fallthru
      _
    // Predicated region
    $region26: #{tpu_custom_call.1} parent=1 // pred_check
      _
    $region27: #{tpu_custom_call.1} parent=1 // pred_check_branch
      %69 = sbr.rel (0) target = $region29
    $region28: #{tpu_custom_call.1} parent=1 // pred_region
      _
    $region29: #{tpu_custom_call.1} parent=1 // pred_fallthru
      _
    // Predicated region
    $region30: #{tpu_custom_call.1} parent=1 // pred_check
      _
    $region31: #{tpu_custom_call.1} parent=1 // pred_check_branch
      %71 = sbr.rel (0) target = $region33
    $region32: #{tpu_custom_call.1} parent=1 // pred_region
      _
    $region33: #{tpu_custom_call.1} parent=1 // pred_fallthru
      _
    // Predicated region
    $region34: #{tpu_custom_call.1} parent=1 // pred_check
      _
    $region35: #{tpu_custom_call.1} parent=1 // pred_check_branch
      %73 = sbr.rel (0) target = $region37
    $region36: #{tpu_custom_call.1} parent=1 // pred_region
      _
    $region37: #{tpu_custom_call.1} parent=1 // pred_fallthru
      _
    // Predicated region
    $region38: #{tpu_custom_call.1} parent=1 // pred_check
      _
    $region39: #{tpu_custom_call.1} parent=1 // pred_check_branch
      %75 = sbr.rel (0) target = $region41
    $region40: #{tpu_custom_call.1} parent=1 // pred_region
      %76 = dma.done [#allocation4], 64
    $region41: #{tpu_custom_call.1} parent=1 // pred_fallthru
      _
    // Predicated region
    $region42: #{tpu_custom_call.1} parent=1 // pred_check
      _
    $region43: #{tpu_custom_call.1} parent=1 // pred_check_branch
      %78 = sbr.rel (0) target = $region45
    $region44: #{tpu_custom_call.1} parent=1 // pred_region
      %79 = dma.done [#allocation6], 4096
    $region45: #{tpu_custom_call.1} parent=1 // pred_fallthru
      _
    // Predicated region
    $region46: #{tpu_custom_call.1} parent=1 // pred_check
      _
    $region47: #{tpu_custom_call.1} parent=1 // pred_check_branch
      %81 = sbr.rel (0) target = $region49
    $region48: #{tpu_custom_call.1} parent=1 // pred_region
      %82 = dma.done [#allocation6], 2048
    $region49: #{tpu_custom_call.1} parent=1 // pred_fallthru
      _
    // Predicated region
    $region50: #{tpu_custom_call.1} parent=1 // pred_check
      _
    $region51: #{tpu_custom_call.1} parent=1 // pred_check_branch
      %84 = sbr.rel (0) target = $region53
    $region52: #{tpu_custom_call.1} parent=1 // pred_region
      %85 = dma.done [#allocation9], 2048
    $region53: #{tpu_custom_call.1} parent=1 // pred_fallthru
      _
    %v86 = vld [vmem:[#allocation3] sm:$0xf]
    %v87 = vld [vmem:[#allocation5] sm:$0xff]
    %v88 = vld [vmem:[#allocation5 + $0x8] sm:$0xff]
    %v89 = vld [vmem:[#allocation5 + $0x10] sm:$0xff]
    %v90 = vld [vmem:[#allocation5 + $0x18] sm:$0xff]
    %v91 = vld [vmem:[#allocation5 + $0x20] sm:$0xff]
    %v92 = vld [vmem:[#allocation5 + $0x28] sm:$0xff]
    %v93 = vld [vmem:[#allocation5 + $0x30] sm:$0xff]
    %v94 = vld [vmem:[#allocation5 + $0x38] sm:$0xff]
    %v95 = vld [vmem:[#allocation5 + $0x40] sm:$0xff]
    %v96 = vld [vmem:[#allocation5 + $0x48] sm:$0xff]
    %v97 = vld [vmem:[#allocation5 + $0x50] sm:$0xff]
    %v98 = vld [vmem:[#allocation5 + $0x58] sm:$0xff]
    %v99 = vld [vmem:[#allocation5 + $0x60] sm:$0xff]
    %v100 = vld [vmem:[#allocation5 + $0x68] sm:$0xff]
    %v101 = vld [vmem:[#allocation5 + $0x70] sm:$0xff]
    %v102 = vld [vmem:[#allocation5 + $0x78] sm:$0xff]
    %v103 = vld [vmem:[#allocation5 + $0x80] sm:$0xff]
    %v104 = vld [vmem:[#allocation5 + $0x88] sm:$0xff]
    %v105 = vld [vmem:[#allocation5 + $0x90] sm:$0xff]
    %v106 = vld [vmem:[#allocation5 + $0x98] sm:$0xff]
    %v107 = vld [vmem:[#allocation5 + $0xa0] sm:$0xff]
    %v108 = vld [vmem:[#allocation5 + $0xa8] sm:$0xff]
    %v109 = vld [vmem:[#allocation5 + $0xb0] sm:$0xff]
    %v110 = vld [vmem:[#allocation5 + $0xb8] sm:$0xff]
    %v111 = vld [vmem:[#allocation5 + $0xc0] sm:$0xff]
    %v112 = vld [vmem:[#allocation5 + $0xc8] sm:$0xff]
    %v113 = vld [vmem:[#allocation5 + $0xd0] sm:$0xff]
    %v114 = vld [vmem:[#allocation5 + $0xd8] sm:$0xff]
    %v115 = vld [vmem:[#allocation5 + $0xe0] sm:$0xff]
    %v116 = vld [vmem:[#allocation5 + $0xe8] sm:$0xff]
    %v117 = vld [vmem:[#allocation5 + $0xf0] sm:$0xff]
    %v118 = vld [vmem:[#allocation5 + $0xf8] sm:$0xff]
    %v119 = vld [vmem:[%s2] sm:$0x1]
    %v121 = vlaneseq
    %v122 = vshrl.u32 %v121, 7
    %v123 = vsub.s32 0, %v122
    %v124 = vrot.slane %v119, %v123
    %v128 = vunpack.c.l.s4 1983009808
    %v129 = vunpack.c.0.s8 %v128
    %v130 = vlaneseq
    %v131 = vshrl.u32 %v130, 7
    %v132 = vsub.s32 %v129, %v131
    %v133 = vrot.slane %v86, %v132
    %v134 = vcombine.high %v133, %v133
    %137 = vmatprep.subr.mxu0 0.0
    %138 = vmatpush1.msra.mxu0 %v87
    %139 = vmatprep.subr.mxu0 0.0
    %140 = vmatpush1.msra.mxu0 %v88
    %141 = vmatprep.subr.mxu0 0.0
    %142 = vmatpush1.msra.mxu0 %v89
    %143 = vmatprep.subr.mxu0 0.0
    %144 = vmatpush1.msra.mxu0 %v90
    %145 = vmatprep.subr.mxu0 0.0
    %146 = vmatpush1.msra.mxu0 %v91
    %147 = vmatprep.subr.mxu0 0.0
    %148 = vmatpush1.msra.mxu0 %v92
    %149 = vmatprep.subr.mxu0 0.0
    %150 = vmatpush1.msra.mxu0 %v93
    %151 = vmatprep.subr.mxu0 0.0
    %152 = vmatpush1.msra.mxu0 %v94
    %153 = vmatprep.subr.mxu0 0.0
    %154 = vmatpush1.msra.mxu0 %v95
    %155 = vmatprep.subr.mxu0 0.0
    %156 = vmatpush1.msra.mxu0 %v96
    %157 = vmatprep.subr.mxu0 0.0
    %158 = vmatpush1.msra.mxu0 %v97
    %159 = vmatprep.subr.mxu0 0.0
    %160 = vmatpush1.msra.mxu0 %v98
    %161 = vmatprep.subr.mxu0 0.0
    %162 = vmatpush1.msra.mxu0 %v99
    %163 = vmatprep.subr.mxu0 0.0
    %164 = vmatpush1.msra.mxu0 %v100
    %165 = vmatprep.subr.mxu0 0.0
    %166 = vmatpush1.msra.mxu0 %v101
    %167 = vmatprep.subr.mxu0 0.0
    %168 = vmatpush1.msra.mxu0 %v102
    %169 = vmatprep.subr.mxu0 0.0
    %170 = vmatpush1.msra.mxu0 %v103
    %171 = vmatprep.subr.mxu0 0.0
    %172 = vmatpush1.msra.mxu0 %v104
    %173 = vmatprep.subr.mxu0 0.0
    %174 = vmatpush1.msra.mxu0 %v105
    %175 = vmatprep.subr.mxu0 0.0
    %176 = vmatpush1.msra.mxu0 %v106
    %177 = vmatprep.subr.mxu0 0.0
    %178 = vmatpush1.msra.mxu0 %v107
    %179 = vmatprep.subr.mxu0 0.0
    %180 = vmatpush1.msra.mxu0 %v108
    %181 = vmatprep.subr.mxu0 0.0
    %182 = vmatpush1.msra.mxu0 %v109
    %183 = vmatprep.subr.mxu0 0.0
    %184 = vmatpush1.msra.mxu0 %v110
    %185 = vmatprep.subr.mxu0 0.0
    %186 = vmatpush1.msra.mxu0 %v111
    %187 = vmatprep.subr.mxu0 0.0
    %188 = vmatpush1.msra.mxu0 %v112
    %189 = vmatprep.subr.mxu0 0.0
    %190 = vmatpush1.msra.mxu0 %v113
    %191 = vmatprep.subr.mxu0 0.0
    %192 = vmatpush1.msra.mxu0 %v114
    %193 = vmatprep.subr.mxu0 0.0
    %194 = vmatpush1.msra.mxu0 %v115
    %195 = vmatprep.subr.mxu0 0.0
    %196 = vmatpush1.msra.mxu0 %v116
    %197 = vmatprep.subr.mxu0 0.0
    %198 = vmatpush1.msra.mxu0 %v117
    %199 = vmatprep.subr.mxu0 0.0
    %200 = vmatpush1.msra.mxu0 %v118
    %201 = vmatprep.mubr.f32.mxu0 %v134
    %202 = vmatmul.mubr.f32.gmra.mrb[0].mxu0 %v133
    %v203 = vpop.f32.mrb[0].mxu0
    %v204 = vadd.f32 %v124, %v203
    %v205 = vpop.f32.mrb[0].mxu0
    %206 = vdwg.mxu0
    %vm207 = vcmp.gt.f32.partialorder %v204, 0.0
    %v208 = vmul.f32 %v204, 0.2
    %v209 = vsel %vm207, %v204, %v208
    %v210 = vld [vmem:[#allocation7] sm:$0xff]
    %v211 = vld [vmem:[#allocation7 + $0x8] sm:$0xff]
    %v212 = vld [vmem:[#allocation7 + $0x10] sm:$0xff]
    %v213 = vld [vmem:[#allocation7 + $0x18] sm:$0xff]
    %v214 = vld [vmem:[#allocation7 + $0x20] sm:$0xff]
    %v215 = vld [vmem:[#allocation7 + $0x28] sm:$0xff]
    %v216 = vld [vmem:[#allocation7 + $0x30] sm:$0xff]
    %v217 = vld [vmem:[#allocation7 + $0x38] sm:$0xff]
    %v218 = vld [vmem:[#allocation7 + $0x40] sm:$0xff]
    %v219 = vld [vmem:[#allocation7 + $0x48] sm:$0xff]
    %v220 = vld [vmem:[#allocation7 + $0x50] sm:$0xff]
    %v221 = vld [vmem:[#allocation7 + $0x58] sm:$0xff]
    %v222 = vld [vmem:[#allocation7 + $0x60] sm:$0xff]
    %v223 = vld [vmem:[#allocation7 + $0x68] sm:$0xff]
    %v224 = vld [vmem:[#allocation7 + $0x70] sm:$0xff]
    %v225 = vld [vmem:[#allocation7 + $0x78] sm:$0xff]
    %v226 = vld [vmem:[%s4] sm:$0x1]
    %v228 = vlaneseq
    %v229 = vshrl.u32 %v228, 7
    %v230 = vsub.s32 0, %v229
    %v231 = vrot.slane %v226, %v230
    %233 = vmatprep.subr.mxu0 0.0
    %234 = vmatpush1.msra.mxu0 %v210
    %235 = vmatprep.subr.mxu0 0.0
    %236 = vmatpush1.msra.mxu0 %v211
    %237 = vmatprep.subr.mxu0 0.0
    %238 = vmatpush1.msra.mxu0 %v212
    %239 = vmatprep.subr.mxu0 0.0
    %240 = vmatpush1.msra.mxu0 %v213
    %241 = vmatprep.subr.mxu0 0.0
    %242 = vmatpush1.msra.mxu0 %v214
    %243 = vmatprep.subr.mxu0 0.0
    %244 = vmatpush1.msra.mxu0 %v215
    %245 = vmatprep.subr.mxu0 0.0
    %246 = vmatpush1.msra.mxu0 %v216
    %247 = vmatprep.subr.mxu0 0.0
    %248 = vmatpush1.msra.mxu0 %v217
    %249 = vmatprep.subr.mxu0 0.0
    %250 = vmatpush1.msra.mxu0 %v218
    %251 = vmatprep.subr.mxu0 0.0
    %252 = vmatpush1.msra.mxu0 %v219
    %253 = vmatprep.subr.mxu0 0.0
    %254 = vmatpush1.msra.mxu0 %v220
    %255 = vmatprep.subr.mxu0 0.0
    %256 = vmatpush1.msra.mxu0 %v221
    %257 = vmatprep.subr.mxu0 0.0
    %258 = vmatpush1.msra.mxu0 %v222
    %259 = vmatprep.subr.mxu0 0.0
    %260 = vmatpush1.msra.mxu0 %v223
    %261 = vmatprep.subr.mxu0 0.0
    %262 = vmatpush1.msra.mxu0 %v224
    %263 = vmatprep.subr.mxu0 0.0
    %264 = vmatpush1.msra.mxu0 %v225
    %265 = vmatprep.subr.mxu0 0.0
    %266 = vmatpush1.msra.mxu0 0.0
    %267 = vmatprep.subr.mxu0 0.0
    %268 = vmatpush1.msra.mxu0 0.0
    %269 = vmatprep.subr.mxu0 0.0
    %270 = vmatpush1.msra.mxu0 0.0
    %271 = vmatprep.subr.mxu0 0.0
    %272 = vmatpush1.msra.mxu0 0.0
    %273 = vmatprep.subr.mxu0 0.0
    %274 = vmatpush1.msra.mxu0 0.0
    %275 = vmatprep.subr.mxu0 0.0
    %276 = vmatpush1.msra.mxu0 0.0
    %277 = vmatprep.subr.mxu0 0.0
    %278 = vmatpush1.msra.mxu0 0.0
    %279 = vmatprep.subr.mxu0 0.0
    %280 = vmatpush1.msra.mxu0 0.0
    %281 = vmatprep.subr.mxu0 0.0
    %282 = vmatpush1.msra.mxu0 0.0
    %283 = vmatprep.subr.mxu0 0.0
    %284 = vmatpush1.msra.mxu0 0.0
    %285 = vmatprep.subr.mxu0 0.0
    %286 = vmatpush1.msra.mxu0 0.0
    %287 = vmatprep.subr.mxu0 0.0
    %288 = vmatpush1.msra.mxu0 0.0
    %289 = vmatprep.subr.mxu0 0.0
    %290 = vmatpush1.msra.mxu0 0.0
    %291 = vmatprep.subr.mxu0 0.0
    %292 = vmatpush1.msra.mxu0 0.0
    %293 = vmatprep.subr.mxu0 0.0
    %294 = vmatpush1.msra.mxu0 0.0
    %295 = vmatprep.subr.mxu0 0.0
    %296 = vmatpush1.msra.mxu0 0.0
    %297 = vmatprep.mubr.f32.mxu0 0.0
    %298 = vmatmul.mubr.f32.gmra.mrb[0].mxu0 %v209
    %v299 = vpop.f32.mrb[0].mxu0
    %v300 = vadd.f32 %v231, %v299
    %v301 = vpop.f32.mrb[0].mxu0
    %302 = vdwg.mxu0
    %vm303 = vcmp.gt.f32.partialorder %v300, 0.0
    %v304 = vmul.f32 %v300, 0.2
    %v305 = vsel %vm303, %v300, %v304
    %v306 = vld [vmem:[#allocation8] sm:$0xff]
    %v307 = vld [vmem:[#allocation8 + $0x8] sm:$0xff]
    %v308 = vld [vmem:[#allocation8 + $0x10] sm:$0xff]
    %v309 = vld [vmem:[#allocation8 + $0x18] sm:$0xff]
    %v310 = vld [vmem:[#allocation8 + $0x20] sm:$0xff]
    %v311 = vld [vmem:[#allocation8 + $0x28] sm:$0xff]
    %v312 = vld [vmem:[#allocation8 + $0x30] sm:$0xff]
    %v313 = vld [vmem:[#allocation8 + $0x38] sm:$0xff]
    %v314 = vld [vmem:[#allocation8 + $0x40] sm:$0xff]
    %v315 = vld [vmem:[#allocation8 + $0x48] sm:$0xff]
    %v316 = vld [vmem:[#allocation8 + $0x50] sm:$0xff]
    %v317 = vld [vmem:[#allocation8 + $0x58] sm:$0xff]
    %v318 = vld [vmem:[#allocation8 + $0x60] sm:$0xff]
    %v319 = vld [vmem:[#allocation8 + $0x68] sm:$0xff]
    %v320 = vld [vmem:[#allocation8 + $0x70] sm:$0xff]
    %v321 = vld [vmem:[#allocation8 + $0x78] sm:$0xff]
    %v322 = vld [vmem:[%s6] sm:$0x1]
    %v324 = vlaneseq
    %v325 = vshrl.u32 %v324, 7
    %v326 = vsub.s32 0, %v325
    %v327 = vrot.slane %v322, %v326
    %329 = vmatprep.subr.mxu0 0.0
    %330 = vmatpush1.msra.mxu0 %v306
    %331 = vmatprep.subr.mxu0 0.0
    %332 = vmatpush1.msra.mxu0 %v307
    %333 = vmatprep.subr.mxu0 0.0
    %334 = vmatpush1.msra.mxu0 %v308
    %335 = vmatprep.subr.mxu0 0.0
    %336 = vmatpush1.msra.mxu0 %v309
    %337 = vmatprep.subr.mxu0 0.0
    %338 = vmatpush1.msra.mxu0 %v310
    %339 = vmatprep.subr.mxu0 0.0
    %340 = vmatpush1.msra.mxu0 %v311
    %341 = vmatprep.subr.mxu0 0.0
    %342 = vmatpush1.msra.mxu0 %v312
    %343 = vmatprep.subr.mxu0 0.0
    %344 = vmatpush1.msra.mxu0 %v313
    %345 = vmatprep.subr.mxu0 0.0
    %346 = vmatpush1.msra.mxu0 %v314
    %347 = vmatprep.subr.mxu0 0.0
    %348 = vmatpush1.msra.mxu0 %v315
    %349 = vmatprep.subr.mxu0 0.0
    %350 = vmatpush1.msra.mxu0 %v316
    %351 = vmatprep.subr.mxu0 0.0
    %352 = vmatpush1.msra.mxu0 %v317
    %353 = vmatprep.subr.mxu0 0.0
    %354 = vmatpush1.msra.mxu0 %v318
    %355 = vmatprep.subr.mxu0 0.0
    %356 = vmatpush1.msra.mxu0 %v319
    %357 = vmatprep.subr.mxu0 0.0
    %358 = vmatpush1.msra.mxu0 %v320
    %359 = vmatprep.subr.mxu0 0.0
    %360 = vmatpush1.msra.mxu0 %v321
    %361 = vmatprep.subr.mxu0 0.0
    %362 = vmatpush1.msra.mxu0 0.0
    %363 = vmatprep.subr.mxu0 0.0
    %364 = vmatpush1.msra.mxu0 0.0
    %365 = vmatprep.subr.mxu0 0.0
    %366 = vmatpush1.msra.mxu0 0.0
    %367 = vmatprep.subr.mxu0 0.0
    %368 = vmatpush1.msra.mxu0 0.0
    %369 = vmatprep.subr.mxu0 0.0
    %370 = vmatpush1.msra.mxu0 0.0
    %371 = vmatprep.subr.mxu0 0.0
    %372 = vmatpush1.msra.mxu0 0.0
    %373 = vmatprep.subr.mxu0 0.0
    %374 = vmatpush1.msra.mxu0 0.0
    %375 = vmatprep.subr.mxu0 0.0
    %376 = vmatpush1.msra.mxu0 0.0
    %377 = vmatprep.subr.mxu0 0.0
    %378 = vmatpush1.msra.mxu0 0.0
    %379 = vmatprep.subr.mxu0 0.0
    %380 = vmatpush1.msra.mxu0 0.0
    %381 = vmatprep.subr.mxu0 0.0
    %382 = vmatpush1.msra.mxu0 0.0
    %383 = vmatprep.subr.mxu0 0.0
    %384 = vmatpush1.msra.mxu0 0.0
    %385 = vmatprep.subr.mxu0 0.0
    %386 = vmatpush1.msra.mxu0 0.0
    %387 = vmatprep.subr.mxu0 0.0
    %388 = vmatpush1.msra.mxu0 0.0
    %389 = vmatprep.subr.mxu0 0.0
    %390 = vmatpush1.msra.mxu0 0.0
    %391 = vmatprep.subr.mxu0 0.0
    %392 = vmatpush1.msra.mxu0 0.0
    %393 = vmatprep.mubr.f32.mxu0 0.0
    %394 = vmatmul.mubr.f32.gmra.mrb[0].mxu0 %v305
    %v395 = vpop.f32.mrb[0].mxu0
    %v396 = vadd.f32 %v327, %v395
    %v397 = vpop.f32.mrb[0].mxu0
    %398 = vdwg.mxu0
    %vm399 = vcmp.gt.f32.partialorder %v396, 0.0
    %v400 = vmul.f32 %v396, 0.2
    %v401 = vsel %vm399, %v396, %v400
    %v402 = vld [vmem:[%s7] sm:$0x1]
    %v404 = vlaneseq
    %v405 = vshrl.u32 %v404, 7
    %v406 = vsub.s32 0, %v405
    %v407 = vrot.slane %v402, %v406
    %v409 = vmul.f32 %v401, %v407
    %vm410 = vcmask 1041408
    %v411 = vsel %vm410, %v409, 0.0
    %412 = vadd.xlane.f32.xlu0 %v411
    %v413 = vpop.xlane.xlu0 %412
    %s414 = sld [smem:[#allocation2]]
    %v415 = vstv %s414
    %v416 = vadd.f32 %v413, %v415
    %vm417 = vcmask 1024
    %418 = vst.msk [vmem:[%s9] sm:$0x3] %vm417, %v416
    // Predicated region
    $region54: #{tpu_custom_call.1} parent=1 // pred_check
      _
    $region55: #{tpu_custom_call.1} parent=1 // pred_check_branch
      %420 = sbr.rel (0) target = $region57
    $region56: #{tpu_custom_call.1} parent=1 // pred_region
      _
    $region57: #{tpu_custom_call.1} parent=1 // pred_fallthru
      _
    // Predicated region
    $region58: #{tpu_custom_call.1} parent=1 // pred_check
      _
    $region59: #{tpu_custom_call.1} parent=1 // pred_check_branch
      %422 = sbr.rel (0) target = $region61
    $region60: #{tpu_custom_call.1} parent=1 // pred_region
      _
    $region61: #{tpu_custom_call.1} parent=1 // pred_fallthru
      _
    %423 = vsyncpa [#allocation4], 1
    %424 = vsyncpa [#allocation6], 1
    %425 = vsyncpa [#allocation9], 1

</llo_original>
